<compile_context>
chip_gen: v7x
topology: tpu7x:2x2x1
jax: 0.10.0
libtpu: 0.0.40
codegen_flags: <defaults>
</compile_context>

<pallas_src>
import jax
import jax.numpy as jnp
from jax.experimental import pallas as pl
from jax.experimental.pallas import tpu as pltpu


def _silu_kernel(x_ref, o_ref):
    # f32 op-math; exp lands on the EUP, mul on the VPU — fully hidden under
    # the HBM DMA stream for this bandwidth-bound op.
    x = x_ref[...].astype(jnp.float32)
    o_ref[...] = (x * jax.nn.sigmoid(x)).astype(o_ref.dtype)


def _pick_lane_width(n):
    # Widest lane-dense last dim that divides the flat size exactly.
    for w in (1024, 512, 256, 128):
        if n % w == 0:
            return w
    return 128  # ragged case: kernel covers the 128-aligned prefix only


def _chip_defaults():
    """Best-effort generation detection -> (tile_bytes, min_grid_steps)."""
    try:
        kind = jax.devices()[0].device_kind.lower()
    except Exception:
        kind = ""
    if "v7" in kind:
        # 4 MiB tiles: 2 double-buffers x (in + out) = 16 MiB < 32 MiB scoped
        # default; >= 8 grid steps so the parallel axis shards across both TCs.
        return 4 * 1024 * 1024, 8
    # v5e / v6e: 2 MiB tiles, >= 4 steps for pipelining.
    return 2 * 1024 * 1024, 4


def silu(x, *, target_tile_bytes=None, min_grid_steps=None):
    """SiLU applied elementwise; works for any input shape / float dtype."""
    orig_shape = x.shape
    orig_dtype = x.dtype
    n = x.size
    if n == 0:
        return x

    default_tile, default_steps = _chip_defaults()
    if target_tile_bytes is None:
        target_tile_bytes = default_tile
    if min_grid_steps is None:
        min_grid_steps = default_steps

    itemsize = jnp.dtype(orig_dtype).itemsize
    # Dtype-aware row granularity: 8 rows f32, 16 bf16/f16, 32 int8/fp8
    # (sub-32-bit dtypes pack along sublanes).
    sub = 8 * max(1, 4 // itemsize)

    x_flat = jnp.ravel(x)
    lanes = _pick_lane_width(n)
    n_aligned = (n // lanes) * lanes  # == n unless lanes == 128 and n % 128

    if n_aligned == 0:
        # Fewer than 128 elements: a kernel launch is pure overhead.
        xf = x_flat.astype(jnp.float32)
        return (xf * jax.nn.sigmoid(xf)).astype(orig_dtype).reshape(orig_shape)

    rows = n_aligned // lanes
    x2d = x_flat[:n_aligned].reshape(rows, lanes)  # no-op when already aligned

    # Row tile ~target_tile_bytes, capped so the grid has >= min_grid_steps
    # steps (keeps double-buffering/pipelining alive and enables the v7x
    # dual-TC split). Partial last block along the row axis is fine: OOB
    # output writes are dropped.
    tr = max(sub, (target_tile_bytes // (lanes * itemsize)) // sub * sub)
    if rows <= sub:
        tr = rows  # full-extent block is always legal
    else:
        cap = max(sub, (pl.cdiv(rows, min_grid_steps) // sub) * sub)
        tr = min(tr, cap)
    grid = (pl.cdiv(rows, tr),)

    n_k = rows * lanes
    cost = pl.CostEstimate(
        flops=5 * n_k,
        transcendentals=n_k,
        bytes_accessed=2 * n_k * itemsize,
    )

    out2d = pl.pallas_call(
        _silu_kernel,
        out_shape=jax.ShapeDtypeStruct((rows, lanes), orig_dtype),
        grid_spec=pltpu.PrefetchScalarGridSpec(
            num_scalar_prefetch=0,
            grid=grid,
            in_specs=[pl.BlockSpec((tr, lanes), lambda i: (i, 0))],
            out_specs=pl.BlockSpec((tr, lanes), lambda i: (i, 0)),
        ),
        compiler_params=pltpu.CompilerParams(
            dimension_semantics=("parallel",),
        ),
        cost_estimate=cost,
    )(x2d)

    out_flat = out2d.reshape(-1)
    if n_aligned != n:
        # <=127-element tail handled outside the kernel: no full-array
        # pad/trim HBM passes.
        tail = x_flat[n_aligned:].astype(jnp.float32)
        tail_out = (tail * jax.nn.sigmoid(tail)).astype(orig_dtype)
        out_flat = jnp.concatenate([out_flat, tail_out])
    return out_flat.reshape(orig_shape)


if __name__ == "__main__":
    key = jax.random.PRNGKey(0)

    # NCHW, matching the PyTorch convention for conv-style activations.
    x = jax.random.normal(key, (2, 4, 16, 16), dtype=jnp.float32)
    y = silu(x)
    jax.block_until_ready(y)
    y_ref = x * jax.nn.sigmoid(x)
    assert y.shape == x.shape and y.dtype == x.dtype
    assert jnp.allclose(y, y_ref, atol=1e-6, rtol=1e-6)

    # Ragged (non-128-divisible) size: kernel on the 128-aligned prefix,
    # plain-JAX tail.
    x2 = jax.random.normal(jax.random.PRNGKey(1), (2, 3, 37), dtype=jnp.float32)
    y2 = silu(x2)
    jax.block_until_ready(y2)
    assert jnp.allclose(y2, x2 * jax.nn.sigmoid(x2), atol=1e-6, rtol=1e-6)

    # Tiny (<128 elements) falls back to plain JAX.
    x3 = jax.random.normal(jax.random.PRNGKey(2), (3, 5, 7), dtype=jnp.float32)
    y3 = silu(x3)
    jax.block_until_ready(y3)
    assert jnp.allclose(y3, x3 * jax.nn.sigmoid(x3), atol=1e-6, rtol=1e-6)

    # bf16: kernel does f32 op-math internally (matches PyTorch behavior).
    x4 = jax.random.normal(jax.random.PRNGKey(3), (2, 4, 16, 16)).astype(jnp.bfloat16)
    y4 = silu(x4)
    jax.block_until_ready(y4)
    x4f = x4.astype(jnp.float32)
    y4_ref = (x4f * jax.nn.sigmoid(x4f)).astype(jnp.bfloat16)
    assert y4.dtype == jnp.bfloat16
    assert jnp.allclose(
        y4.astype(jnp.float32), y4_ref.astype(jnp.float32), atol=1e-2, rtol=1e-2
    )

    print("KERNEL_OK")
</pallas_src>

<mosaic_0001>
module attributes {stable_mosaic.version = 11 : i64} {
  func.func @_silu_kernel(%arg0: i32, %arg1: memref<2x1024xf32, #tpu.memory_space<vmem>>, %arg2: memref<2x1024xf32, #tpu.memory_space<vmem>>) attributes {dimension_semantics = [#tpu.dimension_semantics<parallel>], iteration_bounds = array<i64: 1>, scalar_prefetch = 0 : i64, scratch_operands = 0 : i64, tpu.core_type = #tpu.core_type<tc>, window_params = [{transform_indices = @transform_0, window_bounds = array<i64: 2, 1024>}, {transform_indices = @transform_1, window_bounds = array<i64: 2, 1024>}]} {
    %c0 = arith.constant 0 : index
    %c0_0 = arith.constant 0 : index
    %0 = vector.load %arg1[%c0, %c0_0] : memref<2x1024xf32, #tpu.memory_space<vmem>>, vector<2x1024xf32>
    %1 = arith.negf %0 : vector<2x1024xf32>
    %2 = math.exp %1 : vector<2x1024xf32>
    %cst = arith.constant 1.000000e+00 : f32
    %3 = vector.broadcast %cst : f32 to vector<2x1024xf32>
    %4 = arith.addf %3, %2 : vector<2x1024xf32>
    %5 = arith.divf %3, %4 : vector<2x1024xf32>
    %6 = arith.mulf %0, %5 : vector<2x1024xf32>
    %c0_1 = arith.constant 0 : index
    %c0_2 = arith.constant 0 : index
    %7 = vector.load %arg2[%c0_1, %c0_2] : memref<2x1024xf32, #tpu.memory_space<vmem>>, vector<2x1024xf32>
    tpu.vector_store %arg2[%c0_1, %c0_2], %6 {strides = array<i32>} : memref<2x1024xf32, #tpu.memory_space<vmem>>, vector<2x1024xf32>,
    return
  }
  func.func @transform_0(%arg0: i32) -> (i32, i32) {
    %c0_i32 = arith.constant 0 : i32
    %c0_i32_0 = arith.constant 0 : i32
    return %arg0, %c0_i32 : i32, i32
  }
  func.func @transform_1(%arg0: i32) -> (i32, i32) {
    %c0_i32 = arith.constant 0 : i32
    %c0_i32_0 = arith.constant 0 : i32
    return %arg0, %c0_i32 : i32, i32
  }
}

</mosaic_0001>

<llo_original>
// kernel: tpu_custom_call.1
$region0: #{tpu_custom_call.1}
  #allocation0 [shape = 'u32[]', space=smem, size = 0x4, offset = 0x4, fixed_abs, tag = 'smem constant byte address 0x4 - core index']
  #allocation1 [shape = 'u32[144,128]{1,0:T(1,128)}', space=vmem, size = 0x12000, scoped, tag = 'internal scratch']
  %s0 = inlined_call_operand.hbm [shape: f32[2,1024], index: 0, kind: input, shape index: {}]
  %s1 = inlined_call_operand.hbm [shape: f32[2,1024], index: 1, kind: output, shape index: {}]
  %s2 = sld [smem:[#allocation0]]
  $region18: #{tpu_custom_call.1} parent=0
    _
  %s4 = ssub.s32 1, %s2
  %s5 = scalar_select 0, %s4, %s2
  $region1: #{tpu_custom_call.1} parent=0
    #allocation2 [shape = 'u8[8192]{0}', space=vmem, size = 0x2000, scoped, tag = 'input window, operand 0, single buffered']
    #allocation3 [shape = 's32[1]{0}', space=sflag, size = 0x4, scoped, tag = 'scoped memory for tpu_custom_call.1']
    #allocation4 [shape = 's32[1]{0}', space=sflag, size = 0x4, scoped, tag = 'scoped memory for tpu_custom_call.1']
    #allocation5 [shape = 'u8[8192]{0}', space=vmem, size = 0x2000, scoped, tag = 'output window, operand 0, single buffered']
    %6 = vsyncpa [#allocation3], 0
    %7 = vsyncpa [#allocation4], 0
    // Predicated region
    $region2: #{tpu_custom_call.1} parent=1 // pred_check
      _
    $region3: #{tpu_custom_call.1} parent=1 // pred_check_branch
      %9 = sbr.rel (0) target = $region5
    $region4: #{tpu_custom_call.1} parent=1 // pred_region
      %s11 = ssub.s32 256, 256
      %12 = vsyncadd [#allocation3], %s11
      %s14 = sshll.u32 [#allocation2], 4
      %s15 = int_to_ptr.vmem [resolvable:$true] %s14
      %17 = dma.hbm_to_vmem [thread:$0]  %s0, 256, %s15, [#allocation3]
    $region5: #{tpu_custom_call.1} parent=1 // pred_fallthru
      _
    // Predicated region
    $region6: #{tpu_custom_call.1} parent=1 // pred_check
      _
    $region7: #{tpu_custom_call.1} parent=1 // pred_check_branch
      %19 = sbr.rel (0) target = $region9
    $region8: #{tpu_custom_call.1} parent=1 // pred_region
      %20 = dma.done [#allocation3], 256
    $region9: #{tpu_custom_call.1} parent=1 // pred_fallthru
      _
    %v21 = vld [vmem:[#allocation2] sm:$0xff]
    %v22 = vld [vmem:[#allocation2 + $0x8] sm:$0xff]
    %v23 = vxor.u32 %v21, 2147483648
    %v24 = vxor.u32 %v22, 2147483648
    %v25 = vmul.f32 %v23, 1.442695
    %v26 = vpow.pop %v25
    %v27 = vmul.f32 %v24, 1.442695
    %v28 = vpow.pop %v27
    %v29 = vadd.f32 %v26, 1.0
    %v30 = vadd.f32 %v28, 1.0
    %v31 = vrcp.pop %v29
    %v32 = vmul.f32 1.0, %v31
    %v33 = vrcp.pop %v30
    %v34 = vmul.f32 1.0, %v33
    %v35 = vmul.f32 %v21, %v32
    %v36 = vmul.f32 %v22, %v34
    %37 = vst [vmem:[#allocation5] sm:$0xff] %v35
    %38 = vst [vmem:[#allocation5 + $0x8] sm:$0xff] %v36
    // Predicated region
    $region10: #{tpu_custom_call.1} parent=1 // pred_check
      _
    $region11: #{tpu_custom_call.1} parent=1 // pred_check_branch
      %40 = sbr.rel (0) target = $region13
    $region12: #{tpu_custom_call.1} parent=1 // pred_region
      %s42 = ssub.s32 256, 256
      %43 = vsyncadd [#allocation4], %s42
      %s45 = sshll.u32 [#allocation5], 4
      %s46 = int_to_ptr.vmem [resolvable:$true] %s45
      %48 = dma.vmem_to_hbm [thread:$0]  %s46, 256, %s1, [#allocation4]
    $region13: #{tpu_custom_call.1} parent=1 // pred_fallthru
      _
    // Predicated region
    $region14: #{tpu_custom_call.1} parent=1 // pred_check
      _
    $region15: #{tpu_custom_call.1} parent=1 // pred_check_branch
      %50 = sbr.rel (0) target = $region17
    $region16: #{tpu_custom_call.1} parent=1 // pred_region
      %51 = dma.done [#allocation4], 256
    $region17: #{tpu_custom_call.1} parent=1 // pred_fallthru
      _
    %52 = vsyncpa [#allocation3], 1
    %53 = vsyncpa [#allocation4], 1

</llo_original>
